<compile_context>
chip_gen: v7x
topology: tpu7x:2x2x1
jax: 0.10.0
libtpu: 0.0.40
codegen_flags: <defaults>
</compile_context>

<pallas_src>
import functools

import jax
import jax.numpy as jnp
from jax import lax
from jax.experimental import pallas as pl
from jax.experimental.pallas import tpu as pltpu


LANE = 128                             # TPU lane width: channel (last) dims padded to this.
PASS1_ROW_TILE = 512                   # desired rows of flattened (N*Ho*Wo) per pass-1 step.
PASS2_ROW_TILE = 1024                  # desired rows per pass-2 (elementwise) step.
MIN_ROW_TILE = 128
WEIGHT_SLAB_BYTES = 2 * 1024 * 1024    # per-step bf16 weight-tile budget.
PASS2_VMEM_BYTES = 24 * 1024 * 1024    # pass-2 (bf16 in + f32 out, double-buffered) budget.


def _round_up(x, m):
    return ((x + m - 1) // m) * m


def _vmem_limit_bytes():
    """3/4 of physical VMEM (capped at 96 MiB); fallback 48 MiB (safe on v7x's 64 MiB)."""
    try:
        cap = int(pltpu.get_tpu_info().vmem_capacity_bytes)
        return max(32 * 1024 * 1024, min(96 * 1024 * 1024, (cap * 3) // 4))
    except Exception:
        return 48 * 1024 * 1024


def _conv_stats_kernel(p_ref, w_ref, y_ref, stats_ref):
    """Pass 1: one fat bf16 MXU matmul per (row, cout) tile + per-tile partial BN stats.

    p_ref:     (tile_rows, K_p)        bf16 im2col patches tile   (K_p ~ KH*KW*Cin)
    w_ref:     (K_p, tile_cout)        bf16 weight tile
    y_ref:     (tile_rows, tile_cout)  bf16 raw conv output tile
    stats_ref: (1, 2, tile_cout)       f32 per-tile [sum; sum-of-squares] over rows
    """
    y = jnp.dot(p_ref[...], w_ref[...], preferred_element_type=jnp.float32)
    y_ref[...] = y.astype(y_ref.dtype)
    # Two direct vector stores (no concat relayout); stats reduced in f32 before downcast.
    stats_ref[0, 0:1, :] = jnp.sum(y, axis=0, keepdims=True)
    stats_ref[0, 1:2, :] = jnp.sum(y * y, axis=0, keepdims=True)


def _bn_apply_kernel(y_ref, a_ref, b_ref, o_ref):
    """Pass 2: folded BN affine, single FMA per element: o = y * a + b (f32 out)."""
    o_ref[...] = (y_ref[...].astype(jnp.float32) * a_ref[...] + b_ref[...]).astype(o_ref.dtype)


def conv_bn(x_nchw, w_oihw, gamma, beta, *, stride=1, pad=1, eps=1e-5):
    """PyTorch-equivalent ConvBn forward (Conv2d bias=False + training-mode BatchNorm2d)."""
    N, Cin, H, W = x_nchw.shape
    Cout, Cin_w, KH, KW = w_oihw.shape
    assert Cin == Cin_w
    Ho = (H + 2 * pad - KH) // stride + 1
    Wo = (W + 2 * pad - KW) // stride + 1

    rows = N * Ho * Wo
    K = KH * KW * Cin
    # Pad the contraction dim to a lane multiple only when it is big enough to matter.
    K_p = _round_up(K, LANE) if K >= 256 else K
    cout_p = _round_up(Cout, LANE)

    f32 = jnp.float32
    bf16 = jnp.bfloat16

    # ---- tiling -----------------------------------------------------------------------
    tile1 = PASS1_ROW_TILE
    while tile1 > MIN_ROW_TILE and (rows + tile1 - 1) // tile1 < 4:
        tile1 //= 2            # keep >=4 row tiles so v7x's two TensorCores stay busy

    tile2 = PASS2_ROW_TILE
    bytes_per_row2 = cout_p * (2 + 4)   # bf16 in + f32 out
    while tile2 > tile1 and 2 * tile2 * bytes_per_row2 > PASS2_VMEM_BYTES:
        tile2 //= 2
    tile2 = max(tile2, tile1)
    if rows <= tile2:
        tile2 = _round_up(rows, tile1)  # single (full-extent) pass-2 step

    rows_p = _round_up(rows, tile2)     # multiple of both tile1 and tile2
    num_row_tiles = rows_p // tile1

    tile_cout = LANE
    for cand in sorted({cout_p, 2048, 1024, 512, 256, 128}, reverse=True):
        if cand <= cout_p and cout_p % cand == 0 and K_p * cand * 2 <= WEIGHT_SLAB_BYTES:
            tile_cout = cand
            break
    num_cout_tiles = cout_p // tile_cout

    # ---- layout glue (plain JAX): NCHW -> padded NHWC -> bf16 im2col patches -----------
    # TODO(synk): build the patch tile inside pass 1 from a halo'd NHWC block (manual DMA)
    # to avoid materializing the KH*KW-amplified patches matrix in HBM at all.
    x_nhwc = jnp.transpose(x_nchw, (0, 2, 3, 1)).astype(bf16)
    x_padded = jnp.pad(x_nhwc, ((0, 0), (pad, pad), (pad, pad), (0, 0)))
    slabs = []
    for kh in range(KH):
        for kw in range(KW):
            slabs.append(
                x_padded[:, kh:kh + stride * (Ho - 1) + 1:stride,
                            kw:kw + stride * (Wo - 1) + 1:stride, :])   # (N, Ho, Wo, Cin)
    patches = jnp.stack(slabs, axis=3).reshape(rows, K)                 # k = tap*Cin + cin
    # Zero-padded rows give exactly-zero conv outputs (no bias), so they add nothing to the
    # BN sums; mean/var below divide by the true row count.
    patches = jnp.pad(patches, ((0, rows_p - rows), (0, K_p - K)))

    # OIHW -> (KH*KW*Cin, Cout) with k = (kh*KW + kw)*Cin + cin, padded & bf16.
    w_mat = jnp.transpose(w_oihw, (2, 3, 1, 0)).reshape(K, Cout).astype(bf16)
    w_mat = jnp.pad(w_mat, ((0, K_p - K), (0, cout_p - Cout)))

    gamma_p = jnp.pad(gamma.astype(f32), (0, cout_p - Cout))
    beta_p = jnp.pad(beta.astype(f32), (0, cout_p - Cout))

    vmem_limit = _vmem_limit_bytes()
    cparams1 = pltpu.CompilerParams(
        dimension_semantics=("parallel", "parallel"),
        vmem_limit_bytes=vmem_limit,
    )
    cparams2 = pltpu.CompilerParams(
        dimension_semantics=("parallel",),
        vmem_limit_bytes=vmem_limit,
    )

    # ---- pass 1: tiled bf16 conv matmul + per-tile partial channel stats ---------------
    conv_flat, stats = pl.pallas_call(
        _conv_stats_kernel,
        out_shape=(
            jax.ShapeDtypeStruct((rows_p, cout_p), bf16),
            jax.ShapeDtypeStruct((num_row_tiles, 2, cout_p), f32),
        ),
        grid_spec=pltpu.PrefetchScalarGridSpec(
            num_scalar_prefetch=0,
            grid=(num_row_tiles, num_cout_tiles),
            in_specs=[
                pl.BlockSpec((tile1, K_p), lambda r, c: (r, 0)),
                pl.BlockSpec((K_p, tile_cout), lambda r, c: (0, c)),
            ],
            out_specs=(
                pl.BlockSpec((tile1, tile_cout), lambda r, c: (r, c)),
                pl.BlockSpec((1, 2, tile_cout), lambda r, c: (r, 0, c)),
            ),
        ),
        compiler_params=cparams1,
    )(patches, w_mat)

    # ---- tiny cross-tile reduce + fold BN into one affine (plain JAX, f32) -------------
    total = jnp.sum(stats, axis=0)            # (2, cout_p) exact partial-sum reduce
    m = float(rows)
    mean = total[0] / m
    var = total[1] / m - mean * mean          # biased variance (training-mode BN)
    # TODO(synk): switch to a shifted / Welford-style combine if f32 E[y^2]-mean^2
    # cancellation becomes visible at production sizes.
    a = gamma_p * lax.rsqrt(var + eps)
    b = beta_p - mean * a

    # ---- pass 2: wide row-tiled fused affine (bf16 in, f32 out) ------------------------
    y_flat = pl.pallas_call(
        _bn_apply_kernel,
        out_shape=jax.ShapeDtypeStruct((rows_p, cout_p), f32),
        grid_spec=pltpu.PrefetchScalarGridSpec(
            num_scalar_prefetch=0,
            grid=(rows_p // tile2,),
            in_specs=[
                pl.BlockSpec((tile2, cout_p), lambda r: (r, 0)),
                pl.BlockSpec((1, cout_p), lambda r: (0, 0)),
                pl.BlockSpec((1, cout_p), lambda r: (0, 0)),
            ],
            out_specs=pl.BlockSpec((tile2, cout_p), lambda r: (r, 0)),
        ),
        compiler_params=cparams2,
    )(conv_flat, a.reshape(1, cout_p), b.reshape(1, cout_p))

    # TODO(synk): the NCHW<->NHWC transposes are kept only to match the PyTorch module's
    # layout; drop them (or fuse into pass 2) if downstream consumers accept NHWC.
    out_nhwc = y_flat[:rows, :Cout].reshape(N, Ho, Wo, Cout)
    return jnp.transpose(out_nhwc, (0, 3, 1, 2))  # back to NCHW


def conv_bn_reference(x_nchw, w_oihw, gamma, beta, *, stride=1, pad=1, eps=1e-5):
    """Pure-JAX all-f32 reference (lax conv + batch-stat BN) for validation."""
    y = lax.conv_general_dilated(
        x_nchw.astype(jnp.float32), w_oihw.astype(jnp.float32),
        window_strides=(stride, stride), padding=[(pad, pad), (pad, pad)],
        dimension_numbers=("NCHW", "OIHW", "NCHW"))
    mean = jnp.mean(y, axis=(0, 2, 3), keepdims=True)
    var = jnp.mean((y - mean) ** 2, axis=(0, 2, 3), keepdims=True)
    y = (y - mean) * lax.rsqrt(var + eps)
    return y * gamma.reshape(1, -1, 1, 1) + beta.reshape(1, -1, 1, 1)


if __name__ == "__main__":
    # ConvBn(in_channels=4, out_channels=8, kernel_size=3, stride=1, pad=1)
    N, Cin, H, W = 2, 4, 16, 16
    Cout, KH, KW = 8, 3, 3
    stride, pad = 1, 1

    key = jax.random.PRNGKey(0)
    kx, kw_key, kg, kb = jax.random.split(key, 4)
    x = jax.random.normal(kx, (N, Cin, H, W), dtype=jnp.float32)
    w = jax.random.normal(kw_key, (Cout, Cin, KH, KW), dtype=jnp.float32) * 0.1
    gamma = 1.0 + 0.1 * jax.random.normal(kg, (Cout,), dtype=jnp.float32)
    beta = 0.1 * jax.random.normal(kb, (Cout,), dtype=jnp.float32)

    fwd = jax.jit(functools.partial(conv_bn, stride=stride, pad=pad, eps=1e-5))
    out = jax.block_until_ready(fwd(x, w, gamma, beta))

    ref = conv_bn_reference(x, w, gamma, beta, stride=stride, pad=pad, eps=1e-5)
    assert out.shape == (N, Cout, H, W), out.shape
    # bf16 MXU operands + bf16 conv intermediate (f32 accumulation/stats/output) vs. the
    # all-f32 reference: expect ~1e-3..1e-2 absolute deviation on unit-variance outputs.
    err = float(jnp.max(jnp.abs(out - ref)))
    assert jnp.allclose(out, ref, rtol=5e-2, atol=5e-2), err

    print("KERNEL_OK")
</pallas_src>

<mosaic_0001>
module attributes {stable_mosaic.version = 11 : i64} {
  func.func @_conv_stats_kernel(%arg0: i32, %arg1: i32, %arg2: memref<128x36xbf16, #tpu.memory_space<vmem>>, %arg3: memref<36x128xbf16, #tpu.memory_space<vmem>>, %arg4: memref<128x128xbf16, #tpu.memory_space<vmem>>, %arg5: memref<1x2x128xf32, #tpu.memory_space<vmem>>) attributes {dimension_semantics = [#tpu.dimension_semantics<parallel>, #tpu.dimension_semantics<parallel>], iteration_bounds = array<i64: 4, 1>, scalar_prefetch = 0 : i64, scratch_operands = 0 : i64, tpu.core_type = #tpu.core_type<tc>, window_params = [{transform_indices = @transform_0, window_bounds = array<i64: 128, 36>}, {transform_indices = @transform_1, window_bounds = array<i64: 36, 128>}, {transform_indices = @transform_2, window_bounds = array<i64: 128, 128>}, {transform_indices = @transform_3, window_bounds = array<i64: 1, 2, 128>}]} {
    %c0 = arith.constant 0 : index
    %c0_0 = arith.constant 0 : index
    %0 = vector.load %arg2[%c0, %c0_0] : memref<128x36xbf16, #tpu.memory_space<vmem>>, vector<128x36xbf16>
    %c0_1 = arith.constant 0 : index
    %c0_2 = arith.constant 0 : index
    %1 = vector.load %arg3[%c0_1, %c0_2] : memref<36x128xbf16, #tpu.memory_space<vmem>>, vector<36x128xbf16>
    %cst = arith.constant dense<0.000000e+00> : vector<128x128xf32>
    %2 = tpu.matmul %0, %1, %cst {dimension_numbers = #tpu.dot_dimension_numbers<[1], [0], [0], [1], [0, 0, 1, 1], [], []>} : vector<128x36xbf16>, vector<36x128xbf16>, vector<128x128xf32> -> vector<128x128xf32>
    %3 = arith.truncf %2 : vector<128x128xf32> to vector<128x128xbf16>
    %c0_3 = arith.constant 0 : index
    %c0_4 = arith.constant 0 : index
    %4 = vector.load %arg4[%c0_3, %c0_4] : memref<128x128xbf16, #tpu.memory_space<vmem>>, vector<128x128xbf16>
    tpu.vector_store %arg4[%c0_3, %c0_4], %3 {strides = array<i32>} : memref<128x128xbf16, #tpu.memory_space<vmem>>, vector<128x128xbf16>,
    %cst_5 = arith.constant dense<0.000000e+00> : vector<128xf32>
    %5 = vector.multi_reduction <add>, %2, %cst_5 [0] : vector<128x128xf32> to vector<128xf32>
    %6 = vector.shape_cast %5 : vector<128xf32> to vector<1x128xf32>
    %c0_6 = arith.constant 0 : index
    %c0_7 = arith.constant 0 : index
    %c0_8 = arith.constant 0 : index
    %7 = vector.load %arg5[%c0_6, %c0_7, %c0_8] : memref<1x2x128xf32, #tpu.memory_space<vmem>>, vector<1x1x128xf32>
    %8 = vector.shape_cast %7 : vector<1x1x128xf32> to vector<1x128xf32>
    %9 = vector.shape_cast %6 : vector<1x128xf32> to vector<1x1x128xf32>
    tpu.vector_store %arg5[%c0_6, %c0_7, %c0_8], %9 {strides = array<i32>} : memref<1x2x128xf32, #tpu.memory_space<vmem>>, vector<1x1x128xf32>,
    %10 = arith.mulf %2, %2 : vector<128x128xf32>
    %cst_9 = arith.constant dense<0.000000e+00> : vector<128xf32>
    %11 = vector.multi_reduction <add>, %10, %cst_9 [0] : vector<128x128xf32> to vector<128xf32>
    %12 = vector.shape_cast %11 : vector<128xf32> to vector<1x128xf32>
    %c0_10 = arith.constant 0 : index
    %c1 = arith.constant 1 : index
    %c0_11 = arith.constant 0 : index
    %13 = vector.load %arg5[%c0_10, %c1, %c0_11] : memref<1x2x128xf32, #tpu.memory_space<vmem>>, vector<1x1x128xf32>
    %14 = vector.shape_cast %13 : vector<1x1x128xf32> to vector<1x128xf32>
    %15 = vector.shape_cast %12 : vector<1x128xf32> to vector<1x1x128xf32>
    tpu.vector_store %arg5[%c0_10, %c1, %c0_11], %15 {strides = array<i32>} : memref<1x2x128xf32, #tpu.memory_space<vmem>>, vector<1x1x128xf32>,
    return
  }
  func.func @transform_0(%arg0: i32, %arg1: i32) -> (i32, i32) {
    %c0_i32 = arith.constant 0 : i32
    %c0_i32_0 = arith.constant 0 : i32
    return %arg0, %c0_i32 : i32, i32
  }
  func.func @transform_1(%arg0: i32, %arg1: i32) -> (i32, i32) {
    %c0_i32 = arith.constant 0 : i32
    %c0_i32_0 = arith.constant 0 : i32
    return %c0_i32, %arg1 : i32, i32
  }
  func.func @transform_2(%arg0: i32, %arg1: i32) -> (i32, i32) {
    %c0_i32 = arith.constant 0 : i32
    return %arg0, %arg1 : i32, i32
  }
  func.func @transform_3(%arg0: i32, %arg1: i32) -> (i32, i32, i32) {
    %c0_i32 = arith.constant 0 : i32
    %c0_i32_0 = arith.constant 0 : i32
    return %arg0, %c0_i32, %arg1 : i32, i32, i32
  }
}

module attributes {stable_mosaic.version = 11 : i64} {
  func.func @_bn_apply_kernel(%arg0: i32, %arg1: memref<512x128xbf16, #tpu.memory_space<vmem>>, %arg2: memref<1x128xf32, #tpu.memory_space<vmem>>, %arg3: memref<1x128xf32, #tpu.memory_space<vmem>>, %arg4: memref<512x128xf32, #tpu.memory_space<vmem>>) attributes {dimension_semantics = [#tpu.dimension_semantics<parallel>], iteration_bounds = array<i64: 1>, scalar_prefetch = 0 : i64, scratch_operands = 0 : i64, tpu.core_type = #tpu.core_type<tc>, window_params = [{transform_indices = @transform_0, window_bounds = array<i64: 512, 128>}, {pipeline_mode = #tpu.pipeline_mode<synchronous>, transform_indices = @transform_1, window_bounds = array<i64: 1, 128>}, {pipeline_mode = #tpu.pipeline_mode<synchronous>, transform_indices = @transform_2, window_bounds = array<i64: 1, 128>}, {transform_indices = @transform_3, window_bounds = array<i64: 512, 128>}]} {
    %c0 = arith.constant 0 : index
    %c0_0 = arith.constant 0 : index
    %0 = vector.load %arg1[%c0, %c0_0] : memref<512x128xbf16, #tpu.memory_space<vmem>>, vector<512x128xbf16>
    %1 = arith.extf %0 : vector<512x128xbf16> to vector<512x128xf32>
    %c0_1 = arith.constant 0 : index
    %c0_2 = arith.constant 0 : index
    %2 = vector.load %arg2[%c0_1, %c0_2] : memref<1x128xf32, #tpu.memory_space<vmem>>, vector<1x128xf32>
    %3 = vector.broadcast %2 : vector<1x128xf32> to vector<512x128xf32>
    %4 = arith.mulf %1, %3 : vector<512x128xf32>
    %c0_3 = arith.constant 0 : index
    %c0_4 = arith.constant 0 : index
    %5 = vector.load %arg3[%c0_3, %c0_4] : memref<1x128xf32, #tpu.memory_space<vmem>>, vector<1x128xf32>
    %6 = vector.broadcast %5 : vector<1x128xf32> to vector<512x128xf32>
    %7 = arith.addf %4, %6 : vector<512x128xf32>
    %c0_5 = arith.constant 0 : index
    %c0_6 = arith.constant 0 : index
    %8 = vector.load %arg4[%c0_5, %c0_6] : memref<512x128xf32, #tpu.memory_space<vmem>>, vector<512x128xf32>
    tpu.vector_store %arg4[%c0_5, %c0_6], %7 {strides = array<i32>} : memref<512x128xf32, #tpu.memory_space<vmem>>, vector<512x128xf32>,
    return
  }
  func.func @transform_0(%arg0: i32) -> (i32, i32) {
    %c0_i32 = arith.constant 0 : i32
    %c0_i32_0 = arith.constant 0 : i32
    return %arg0, %c0_i32 : i32, i32
  }
  func.func @transform_1(%arg0: i32) -> (i32, i32) {
    %c0_i32 = arith.constant 0 : i32
    %c0_i32_0 = arith.constant 0 : i32
    %c0_i32_1 = arith.constant 0 : i32
    return %c0_i32, %c0_i32_0 : i32, i32
  }
  func.func @transform_2(%arg0: i32) -> (i32, i32) {
    %c0_i32 = arith.constant 0 : i32
    %c0_i32_0 = arith.constant 0 : i32
    %c0_i32_1 = arith.constant 0 : i32
    return %c0_i32, %c0_i32_0 : i32, i32
  }
  func.func @transform_3(%arg0: i32) -> (i32, i32) {
    %c0_i32 = arith.constant 0 : i32
    %c0_i32_0 = arith.constant 0 : i32
    return %arg0, %c0_i32 : i32, i32
  }
}

</mosaic_0001>

<llo_original>
// kernel: conv_bn.2
$region0: #{conv_bn.2}
  #allocation0 [shape = 'u32[]', space=smem, size = 0x4, offset = 0x4, fixed_abs, tag = 'smem constant byte address 0x4 - core index']
  #allocation1 [shape = 'u32[144,128]{1,0:T(1,128)}', space=vmem, size = 0x12000, scoped, tag = 'internal scratch']
  %s0 = inlined_call_operand.vmem [shape: bf16[512,36], index: 0, kind: input, shape index: {}]
  %s1 = inlined_call_operand.vmem [shape: bf16[36,128], index: 1, kind: input, shape index: {}]
  %s2 = inlined_call_operand.vmem [shape: bf16[512,128], index: 2, kind: output, shape index: {0}]
  %s3 = inlined_call_operand.vmem [shape: f32[4,2,128], index: 3, kind: output, shape index: {1}]
  %4 = xla_tuple %s2, %s3
  %s5 = sld [smem:[#allocation0]]
  $region49: #{conv_bn.2} parent=0
    _
  %s7 = ssub.s32 1, %s5
  %s8 = scalar_select 0, %s7, %s5
  loop: start=0, step=1, limit=6
  $region2: #{conv_bn.2} parent=0 // loop_pre_header
    _
  $region3: #{conv_bn.2} parent=0 // loop_header
    %s10 = sphi 0, %s14
    %p11 = scmp.ge.s32.totalorder %s10, 6
    %s17 = sphi 0, %s29
    %s18 = sphi 0, %s25
    %s19 = sphi 0, %s17
    %s20 = sphi 0, %s18
    %s21 = sphi 0, %s19
    %s22 = sphi 0, %s20
    %s32 = sphi 0, %s34
    %s35 = sphi 0, %s32
    %s36 = sphi 0, %s35
    %s52 = sphi 0, %s36
    %s58 = sphi 0, %s60
    %s61 = sphi 0, %s58
    %s62 = sphi 0, %s61
    %s78 = sphi 0, %s62
    %s86 = sphi 0, %s88
    %s89 = sphi 0, %s86
    %s90 = sphi 0, %s89
    %s106 = sphi 0, %s90
    %s114 = sphi 0, %s116
    %s117 = sphi 0, %s114
    %s118 = sphi 0, %s117
    %s134 = sphi 0, %s118
  $region4: #{conv_bn.2} parent=0 // loop_header_branch
    %13 = sbr.rel (%p11) target = $region8
  $region5: #{conv_bn.2} parent=0 // loop_body
    %s15 = ssub.s32 %s10, 1
    %s16 = ssub.s32 %s10, 2
    %s23 = sadd.s32 1, %s18
    %p24 = scmp.ge.s32.totalorder %s23, 1
    %s25 = scalar_select %p24, 0, %s23
    %s26 = sadd.s32 1, %s17
    %s27 = scalar_select %p24, %s26, %s17
    %p28 = scmp.ge.s32.totalorder %s27, 4
    %s29 = scalar_select %p28, 0, %s27
    %s30 = ssub.s32 %s17, %s29
    %p31 = scmp.eq.s32.totalorder %s30, 0
    %s33 = sadd.s32 %s32, 1
    %s34 = scalar_select %p31, %s32, %s33
    %p37 = pneg %p31
    %p38 = scmp.eq.s32.totalorder %s10, 3
    %p39 = por %p37, %p38
    %p40 = scmp.ne.s32.totalorder %s32, %s35
    %p41 = scmp.eq.s32.totalorder %s10, 0
    %p42 = por %p40, %p41
    %p43 = scmp.ne.s32.totalorder %s32, %s35
    %p44 = scmp.eq.s32.totalorder %s15, 3
    %p45 = por %p43, %p44
    %p46 = scmp.ne.s32.totalorder %s35, %s36
    %p47 = scmp.eq.s32.totalorder %s15, 0
    %p48 = por %p46, %p47
    %p49 = scmp.ne.s32.totalorder %s35, %s36
    %p50 = scmp.eq.s32.totalorder %s16, 3
    %p51 = por %p49, %p50
    %p53 = scmp.ne.s32.totalorder %s36, %s52
    %p54 = scmp.eq.s32.totalorder %s16, 0
    %p55 = por %p53, %p54
    %s56 = ssub.s32 %s18, %s25
    %p57 = scmp.eq.s32.totalorder %s56, 0
    %s59 = sadd.s32 %s58, 1
    %s60 = scalar_select %p57, %s58, %s59
    %p63 = pneg %p57
    %p64 = scmp.eq.s32.totalorder %s10, 3
    %p65 = por %p63, %p64
    %p66 = scmp.ne.s32.totalorder %s58, %s61
    %p67 = scmp.eq.s32.totalorder %s10, 0
    %p68 = por %p66, %p67
    %p69 = scmp.ne.s32.totalorder %s58, %s61
    %p70 = scmp.eq.s32.totalorder %s15, 3
    %p71 = por %p69, %p70
    %p72 = scmp.ne.s32.totalorder %s61, %s62
    %p73 = scmp.eq.s32.totalorder %s15, 0
    %p74 = por %p72, %p73
    %p75 = scmp.ne.s32.totalorder %s61, %s62
    %p76 = scmp.eq.s32.totalorder %s16, 3
    %p77 = por %p75, %p76
    %p79 = scmp.ne.s32.totalorder %s62, %s78
    %p80 = scmp.eq.s32.totalorder %s16, 0
    %p81 = por %p79, %p80
    %s82 = ssub.s32 %s17, %s29
    %s83 = ssub.s32 %s18, %s25
    %s84 = sor.u32 %s82, %s83
    %p85 = scmp.eq.s32.totalorder %s84, 0
    %s87 = sadd.s32 %s86, 1
    %s88 = scalar_select %p85, %s86, %s87
    %p91 = pneg %p85
    %p92 = scmp.eq.s32.totalorder %s10, 3
    %p93 = por %p91, %p92
    %p94 = scmp.ne.s32.totalorder %s86, %s89
    %p95 = scmp.eq.s32.totalorder %s10, 0
    %p96 = por %p94, %p95
    %p97 = scmp.ne.s32.totalorder %s86, %s89
    %p98 = scmp.eq.s32.totalorder %s15, 3
    %p99 = por %p97, %p98
    %p100 = scmp.ne.s32.totalorder %s89, %s90
    %p101 = scmp.eq.s32.totalorder %s15, 0
    %p102 = por %p100, %p101
    %p103 = scmp.ne.s32.totalorder %s89, %s90
    %p104 = scmp.eq.s32.totalorder %s16, 3
    %p105 = por %p103, %p104
    %p107 = scmp.ne.s32.totalorder %s90, %s106
    %p108 = scmp.eq.s32.totalorder %s16, 0
    %p109 = por %p107, %p108
    %s110 = ssub.s32 %s17, %s29
    %s111 = ssub.s32 %s18, %s25
    %s112 = sor.u32 %s110, %s111
    %p113 = scmp.eq.s32.totalorder %s112, 0
    %s115 = sadd.s32 %s114, 1
    %s116 = scalar_select %p113, %s114, %s115
    %p119 = pneg %p113
    %p120 = scmp.eq.s32.totalorder %s10, 3
    %p121 = por %p119, %p120
    %p122 = scmp.ne.s32.totalorder %s114, %s117
    %p123 = scmp.eq.s32.totalorder %s10, 0
    %p124 = por %p122, %p123
    %p125 = scmp.ne.s32.totalorder %s114, %s117
    %p126 = scmp.eq.s32.totalorder %s15, 3
    %p127 = por %p125, %p126
    %p128 = scmp.ne.s32.totalorder %s117, %s118
    %p129 = scmp.eq.s32.totalorder %s15, 0
    %p130 = por %p128, %p129
    %p131 = scmp.ne.s32.totalorder %s117, %s118
    %p132 = scmp.eq.s32.totalorder %s16, 3
    %p133 = por %p131, %p132
    %p135 = scmp.ne.s32.totalorder %s118, %s134
    %p136 = scmp.eq.s32.totalorder %s16, 0
    %p137 = por %p135, %p136
    %p138 = scmp.le.s32.totalorder 1, %s10
    %p139 = scmp.lt.s32.totalorder %s10, 5
    %p140 = pnand %p138, %p139
    %p141 = pneg %p140
    // Predicated region
    $region9: #{conv_bn.2} parent=5 // pred_check
      _
    $region10: #{conv_bn.2} parent=5 // pred_check_branch
      %143 = sbr.rel (%p140) target = $region12
    $region11: #{conv_bn.2} parent=5 // pred_region
      %s144 = ssub.s32 %s10, 1
      // Predicated region
      $region13: #{conv_bn.2} parent=11 // pred_check
        %p145 = pneg %p74
      $region14: #{conv_bn.2} parent=11 // pred_check_branch
        %147 = sbr.rel (%p145) target = $region16
      $region15: #{conv_bn.2} parent=11 // pred_region
        %p148 = scmp.lt.s32.totalorder %s20, 0
        %s149 = scalar_select %p148, %s20, 0
        %s150 = smul.addr %s149, 4
        %s151 = scalar_lea.vmem %s1, %s150
      $region16: #{conv_bn.2} parent=11 // pred_fallthru
        _
    $region12: #{conv_bn.2} parent=5 // pred_fallthru
      _
    %p152 = scmp.lt.s32.totalorder %s10, 4
    // Predicated region
    $region17: #{conv_bn.2} parent=5 // pred_check
      %p153 = pneg %p152
    $region18: #{conv_bn.2} parent=5 // pred_check_branch
      %155 = sbr.rel (%p153) target = $region20
    $region19: #{conv_bn.2} parent=5 // pred_region
      // Predicated region
      $region21: #{conv_bn.2} parent=19 // pred_check
        %p156 = pneg %p42
      $region22: #{conv_bn.2} parent=19 // pred_check_branch
        %158 = sbr.rel (%p156) target = $region24
      $region23: #{conv_bn.2} parent=19 // pred_region
        %s159 = smul.u32 16, %s17
        %p160 = scmp.lt.s32.totalorder %s159, 63
        %s161 = scalar_select %p160, %s159, 63
        %s162 = smul.addr %s161, 4
        %s163 = scalar_lea.vmem %s0, %s162
        %s164 = smul.u32 16, %s17
      $region24: #{conv_bn.2} parent=19 // pred_fallthru
        _
    $region20: #{conv_bn.2} parent=5 // pred_fallthru
      _
    %p165 = scmp.le.s32.totalorder 1, %s10
    %p166 = scmp.lt.s32.totalorder %s10, 5
    %p167 = pnand %p165, %p166
    %p168 = pneg %p167
    // Predicated region
    $region25: #{conv_bn.2} parent=5 // pred_check
      _
    $region26: #{conv_bn.2} parent=5 // pred_check_branch
      %170 = sbr.rel (%p167) target = $region28
    $region27: #{conv_bn.2} parent=5 // pred_region
      %s171 = ssub.s32 %s10, 1
      %s172 = smul.u32 16, %s19
      %p173 = scmp.lt.s32.totalorder %s172, 63
      %s174 = scalar_select %p173, %s172, 63
      %s175 = smul.addr %s174, 4
      %s176 = scalar_lea.vmem %s0, %s175
      %p177 = pneg %p48
      %p178 = pneg %p45
      %p179 = scmp.lt.s32.totalorder %s20, 0
      %s180 = scalar_select %p179, %s20, 0
      %s181 = smul.addr %s180, 4
      %s182 = scalar_lea.vmem %s1, %s181
      %p183 = pneg %p74
      %p184 = pneg %p71
      %p185 = pneg %p102
      %p186 = pneg %p99
      %s187 = smul.u32 16, %s19
      %p188 = scmp.lt.s32.totalorder %s187, 63
      %s189 = scalar_select %p188, %s187, 63
      %p190 = scmp.lt.s32.totalorder %s20, 0
      %s191 = scalar_select %p190, %s20, 0
      %s192 = sadd.s32 %s191, %s189
      %s193 = smul.addr %s192, 4
      %s194 = scalar_lea.vmem %s2, %s193
      %p195 = pneg %p130
      %p196 = pneg %p127
      %p197 = scmp.lt.s32.totalorder %s19, 3
      %s198 = scalar_select %p197, %s19, 3
      %p199 = scmp.lt.s32.totalorder %s20, 0
      %s200 = scalar_select %p199, %s20, 0
      %s201 = sadd.s32 %s200, %s198
      %s202 = smul.addr %s201, 2
      %s203 = scalar_lea.vmem %s3, %s202
      %s204 = smul.u32 16, %s19
      %p205 = scmp.lt.s32.totalorder %s204, 63
      %s206 = scalar_select %p205, %s204, 63
      %s207 = smul.addr %s206, 4
      %s208 = scalar_lea.vmem %s0, %s207
      %s209 = smul.u32 16, %s19
      %p210 = scmp.lt.s32.totalorder %s20, 0
      %s211 = scalar_select %p210, %s20, 0
      %s212 = smul.addr %s211, 4
      %s213 = scalar_lea.vmem %s1, %s212
      %s214 = smul.u32 16, %s19
      %p215 = scmp.lt.s32.totalorder %s214, 63
      %s216 = scalar_select %p215, %s214, 63
      %p217 = scmp.lt.s32.totalorder %s20, 0
      %s218 = scalar_select %p217, %s20, 0
      %s219 = sadd.s32 %s218, %s216
      %s220 = smul.addr %s219, 4
      %s221 = scalar_lea.vmem %s2, %s220
      %s222 = smul.u32 16, %s19
      %p223 = scmp.lt.s32.totalorder %s19, 3
      %s224 = scalar_select %p223, %s19, 3
      %p225 = scmp.lt.s32.totalorder %s20, 0
      %s226 = scalar_select %p225, %s20, 0
      %s227 = sadd.s32 %s226, %s224
      %s228 = smul.addr %s227, 2
      %s229 = scalar_lea.vmem %s3, %s228
      %v231 = vld [vmem:[%s208] sm:$0xf]
      %v232 = vld [vmem:[%s208 + $0x4] sm:$0xf]
      %v233 = vld [vmem:[%s208 + $0x8] sm:$0xf]
      %v234 = vld [vmem:[%s208 + $0xc] sm:$0xf]
      %v235 = vld [vmem:[%s208 + $0x10] sm:$0xf]
      %v236 = vld [vmem:[%s208 + $0x14] sm:$0xf]
      %v237 = vld [vmem:[%s208 + $0x18] sm:$0xf]
      %v238 = vld [vmem:[%s208 + $0x1c] sm:$0xf]
      %v239 = vld [vmem:[%s208 + $0x20] sm:$0xf]
      %v240 = vld [vmem:[%s208 + $0x24] sm:$0xf]
      %v241 = vld [vmem:[%s208 + $0x28] sm:$0xf]
      %v242 = vld [vmem:[%s208 + $0x2c] sm:$0xf]
      %v243 = vld [vmem:[%s208 + $0x30] sm:$0xf]
      %v244 = vld [vmem:[%s208 + $0x34] sm:$0xf]
      %v245 = vld [vmem:[%s208 + $0x38] sm:$0xf]
      %v246 = vld [vmem:[%s208 + $0x3c] sm:$0xf]
      %v247 = vld [vmem:[%s213] sm:$0xf]
      %v248 = vld [vmem:[%s213 + $0x4] sm:$0xf]
      %v249 = vld [vmem:[%s213 + $0x8] sm:$0xf]
      %v250 = vld [vmem:[%s213 + $0xc] sm:$0xf]
      %v251 = vld [vmem:[%s213 + $0x10] sm:$0x3]
      %v268 = vunpack.c.l.b16 %v231
      %v269 = vunpack.c.l.b16 %v232
      %v270 = vunpack.c.l.b16 %v233
      %v271 = vunpack.c.l.b16 %v234
      %v272 = vunpack.c.l.b16 %v235
      %v273 = vunpack.c.l.b16 %v236
      %v274 = vunpack.c.l.b16 %v237
      %v275 = vunpack.c.l.b16 %v238
      %v276 = vunpack.c.l.b16 %v239
      %v277 = vunpack.c.l.b16 %v240
      %v278 = vunpack.c.l.b16 %v241
      %v279 = vunpack.c.l.b16 %v242
      %v280 = vunpack.c.l.b16 %v243
      %v281 = vunpack.c.l.b16 %v244
      %v282 = vunpack.c.l.b16 %v245
      %v283 = vunpack.c.l.b16 %v246
      %v284 = vpack.c.b16 %v269, %v268
      %v285 = vpack.c.b16 %v271, %v270
      %v286 = vpack.c.b16 %v273, %v272
      %v287 = vpack.c.b16 %v275, %v274
      %v288 = vpack.c.b16 %v277, %v276
      %v289 = vpack.c.b16 %v279, %v278
      %v290 = vpack.c.b16 %v281, %v280
      %v291 = vpack.c.b16 %v283, %v282
      %v297 = vunpack.c.l.b16 %v247
      %v298 = vunpack.c.l.b16 %v248
      %v299 = vunpack.c.l.b16 %v249
      %v300 = vunpack.c.l.b16 %v250
      %v301 = vunpack.c.l.b16 %v251
      %v302 = vpack.c.b16 %v298, %v297
      %v303 = vpack.c.b16 %v300, %v299
      %v304 = vpack.c.b16 %v301, %v301
      %vm307 = vcmask 293888
      %v309 = vsel %vm307, %v284, 0
      %v312 = vsel %vm307, %v285, 0
      %v315 = vsel %vm307, %v286, 0
      %v318 = vsel %vm307, %v287, 0
      %v321 = vsel %vm307, %v288, 0
      %v324 = vsel %vm307, %v289, 0
      %v327 = vsel %vm307, %v290, 0
      %v330 = vsel %vm307, %v291, 0
      %vm332 = vcmask 1041408
      %v334 = vsel %vm332, %v304, 0
      %336 = vmatprep.subr.bf16.mxu0 0
      %337 = vmatpush1.bf16.msra.mxu0 %v302
      %338 = vmatprep.subr.bf16.mxu0 0
      %339 = vmatpush1.bf16.msra.mxu0 %v303
      %340 = vmatprep.subr.bf16.mxu0 0
      %341 = vmatpush1.bf16.msra.mxu0 %v334
      %342 = vmatprep.subr.bf16.mxu0 0
      %343 = vmatpush1.bf16.msra.mxu0 0
      %344 = vmatprep.subr.bf16.mxu0 0
      %345 = vmatpush1.bf16.msra.mxu0 0
      %346 = vmatprep.subr.bf16.mxu0 0
      %347 = vmatpush1.bf16.msra.mxu0 0
      %348 = vmatprep.subr.bf16.mxu0 0
      %349 = vmatpush1.bf16.msra.mxu0 0
      %350 = vmatprep.subr.bf16.mxu0 0
      %351 = vmatpush1.bf16.msra.mxu0 0
      %352 = vmatprep.subr.bf16.mxu0 0
      %353 = vmatpush1.bf16.msra.mxu0 0
      %354 = vmatprep.subr.bf16.mxu0 0
      %355 = vmatpush1.bf16.msra.mxu0 0
      %356 = vmatprep.subr.bf16.mxu0 0
      %357 = vmatpush1.bf16.msra.mxu0 0
      %358 = vmatprep.subr.bf16.mxu0 0
      %359 = vmatpush1.bf16.msra.mxu0 0
      %360 = vmatprep.subr.bf16.mxu0 0
      %361 = vmatpush1.bf16.msra.mxu0 0
      %362 = vmatprep.subr.bf16.mxu0 0
      %363 = vmatpush1.bf16.msra.mxu0 0
      %364 = vmatprep.subr.bf16.mxu0 0
      %365 = vmatpush1.bf16.msra.mxu0 0
      %366 = vmatprep.subr.bf16.mxu0 0
      %367 = vmatpush1.bf16.msra.mxu0 0
      %368 = vmatprep.mubr.bf16.mxu0 0
      %369 = vmatmul.mubr.bf16.gmra.mrb[0].mxu0 %v309
      %v370 = vpop.f32.mrb[0].mxu0
      %v371 = vadd.f32 0.0, %v370
      %v372 = vpop.f32.mrb[0].mxu0
      %v373 = vpop.f32.mrb[0].mxu0
      %v374 = vadd.f32 0.0, %v373
      %v375 = vpop.f32.mrb[0].mxu0
      %376 = vmatprep.mubr.bf16.mxu0 0
      %377 = vmatmul.mubr.bf16.gmra.mrb[0].mxu0 %v312
      %v378 = vpop.f32.mrb[0].mxu0
      %v379 = vadd.f32 0.0, %v378
      %v380 = vpop.f32.mrb[0].mxu0
      %v381 = vpop.f32.mrb[0].mxu0
      %v382 = vadd.f32 0.0, %v381
      %v383 = vpop.f32.mrb[0].mxu0
      %384 = vmatprep.mubr.bf16.mxu0 0
      %385 = vmatmul.mubr.bf16.gmra.mrb[0].mxu0 %v315
      %v386 = vpop.f32.mrb[0].mxu0
      %v387 = vadd.f32 0.0, %v386
      %v388 = vpop.f32.mrb[0].mxu0
      %v389 = vpop.f32.mrb[0].mxu0
      %v390 = vadd.f32 0.0, %v389
      %v391 = vpop.f32.mrb[0].mxu0
      %392 = vmatprep.mubr.bf16.mxu0 0
      %393 = vmatmul.mubr.bf16.gmra.mrb[0].mxu0 %v318
      %v394 = vpop.f32.mrb[0].mxu0
      %v395 = vadd.f32 0.0, %v394
      %v396 = vpop.f32.mrb[0].mxu0
      %v397 = vpop.f32.mrb[0].mxu0
      %v398 = vadd.f32 0.0, %v397
      %v399 = vpop.f32.mrb[0].mxu0
      %400 = vmatprep.mubr.bf16.mxu0 0
      %401 = vmatmul.mubr.bf16.gmra.mrb[0].mxu0 %v321
      %v402 = vpop.f32.mrb[0].mxu0
      %v403 = vadd.f32 0.0, %v402
      %v404 = vpop.f32.mrb[0].mxu0
      %v405 = vpop.f32.mrb[0].mxu0
      %v406 = vadd.f32 0.0, %v405
      %v407 = vpop.f32.mrb[0].mxu0
      %408 = vmatprep.mubr.bf16.mxu0 0
      %409 = vmatmul.mubr.bf16.gmra.mrb[0].mxu0 %v324
      %v410 = vpop.f32.mrb[0].mxu0
      %v411 = vadd.f32 0.0, %v410
      %v412 = vpop.f32.mrb[0].mxu0
      %v413 = vpop.f32.mrb[0].mxu0
      %v414 = vadd.f32 0.0, %v413
      %v415 = vpop.f32.mrb[0].mxu0
      %416 = vmatprep.mubr.bf16.mxu0 0
      %417 = vmatmul.mubr.bf16.gmra.mrb[0].mxu0 %v327
      %v418 = vpop.f32.mrb[0].mxu0
      %v419 = vadd.f32 0.0, %v418
      %v420 = vpop.f32.mrb[0].mxu0
      %v421 = vpop.f32.mrb[0].mxu0
      %v422 = vadd.f32 0.0, %v421
      %v423 = vpop.f32.mrb[0].mxu0
      %424 = vmatprep.mubr.bf16.mxu0 0
      %425 = vmatmul.mubr.bf16.gmra.mrb[0].mxu0 %v330
      %v426 = vpop.f32.mrb[0].mxu0
      %v427 = vadd.f32 0.0, %v426
      %v428 = vpop.f32.mrb[0].mxu0
      %v429 = vpop.f32.mrb[0].mxu0
      %v430 = vadd.f32 0.0, %v429
      %v431 = vpop.f32.mrb[0].mxu0
      %432 = vdwg.mxu0
      %v433 = vpack.c.bf16 %v374, %v371
      %v434 = vpack.c.bf16 %v382, %v379
      %v435 = vpack.c.bf16 %v390, %v387
      %v436 = vpack.c.bf16 %v398, %v395
      %v437 = vpack.c.bf16 %v406, %v403
      %v438 = vpack.c.bf16 %v414, %v411
      %v439 = vpack.c.bf16 %v422, %v419
      %v440 = vpack.c.bf16 %v430, %v427
      %v449 = vunpack.c.l.b16 %v433
      %v450 = vunpack.c.h.b16 %v433
      %v451 = vunpack.c.l.b16 %v434
      %v452 = vunpack.c.h.b16 %v434
      %v453 = vunpack.c.l.b16 %v435
      %v454 = vunpack.c.h.b16 %v435
      %v455 = vunpack.c.l.b16 %v436
      %v456 = vunpack.c.h.b16 %v436
      %v457 = vunpack.c.l.b16 %v437
      %v458 = vunpack.c.h.b16 %v437
      %v459 = vunpack.c.l.b16 %v438
      %v460 = vunpack.c.h.b16 %v438
      %v461 = vunpack.c.l.b16 %v439
      %v462 = vunpack.c.h.b16 %v439
      %v463 = vunpack.c.l.b16 %v440
      %v464 = vunpack.c.h.b16 %v440
      %v465 = vpack.c.b16 %v449, %v449
      %v466 = vpack.c.b16 %v450, %v450
      %v467 = vpack.c.b16 %v451, %v451
      %v468 = vpack.c.b16 %v452, %v452
      %v469 = vpack.c.b16 %v453, %v453
      %v470 = vpack.c.b16 %v454, %v454
      %v471 = vpack.c.b16 %v455, %v455
      %v472 = vpack.c.b16 %v456, %v456
      %v473 = vpack.c.b16 %v457, %v457
      %v474 = vpack.c.b16 %v458, %v458
      %v475 = vpack.c.b16 %v459, %v459
      %v476 = vpack.c.b16 %v460, %v460
      %v477 = vpack.c.b16 %v461, %v461
      %v478 = vpack.c.b16 %v462, %v462
      %v479 = vpack.c.b16 %v463, %v463
      %v480 = vpack.c.b16 %v464, %v464
      %497 = vst [vmem:[%s221] sm:$0xf] %v465
      %498 = vst [vmem:[%s221 + $0x4] sm:$0xf] %v466
      %499 = vst [vmem:[%s221 + $0x8] sm:$0xf] %v467
      %500 = vst [vmem:[%s221 + $0xc] sm:$0xf] %v468
      %501 = vst [vmem:[%s221 + $0x10] sm:$0xf] %v469
      %502 = vst [vmem:[%s221 + $0x14] sm:$0xf] %v470
      %503 = vst [vmem:[%s221 + $0x18] sm:$0xf] %v471
      %504 = vst [vmem:[%s221 + $0x1c] sm:$0xf] %v472
      %505 = vst [vmem:[%s221 + $0x20] sm:$0xf] %v473
      %506 = vst [vmem:[%s221 + $0x24] sm:$0xf] %v474
      %507 = vst [vmem:[%s221 + $0x28] sm:$0xf] %v475
      %508 = vst [vmem:[%s221 + $0x2c] sm:$0xf] %v476
      %509 = vst [vmem:[%s221 + $0x30] sm:$0xf] %v477
      %510 = vst [vmem:[%s221 + $0x34] sm:$0xf] %v478
      %511 = vst [vmem:[%s221 + $0x38] sm:$0xf] %v479
      %512 = vst [vmem:[%s221 + $0x3c] sm:$0xf] %v480
      %v513 = vadd.f32 %v371, %v374
      %v514 = vadd.f32 %v513, %v379
      %v515 = vadd.f32 %v514, %v382
      %v516 = vadd.f32 %v515, %v387
      %v517 = vadd.f32 %v516, %v390
      %v518 = vadd.f32 %v517, %v395
      %v519 = vadd.f32 %v518, %v398
      %v520 = vadd.f32 %v519, %v403
      %v521 = vadd.f32 %v520, %v406
      %v522 = vadd.f32 %v521, %v411
      %v523 = vadd.f32 %v522, %v414
      %v524 = vadd.f32 %v523, %v419
      %v525 = vadd.f32 %v524, %v422
      %v526 = vadd.f32 %v525, %v427
      %v527 = vadd.f32 %v526, %v430
      %v528 = vrot.slane %v527, 4
      %v529 = vadd.f32 %v527, %v528
      %v530 = vrot.slane %v529, 2
      %v531 = vadd.f32 %v529, %v530
      %v532 = vrot.slane %v531, 1
      %v533 = vadd.f32 %v531, %v532
      %534 = vst [vmem:[%s229] sm:$0x1] %v533
      %v535 = vmul.f32 %v371, %v371
      %v536 = vmul.f32 %v374, %v374
      %v537 = vmul.f32 %v379, %v379
      %v538 = vmul.f32 %v382, %v382
      %v539 = vmul.f32 %v387, %v387
      %v540 = vmul.f32 %v390, %v390
      %v541 = vmul.f32 %v395, %v395
      %v542 = vmul.f32 %v398, %v398
      %v543 = vmul.f32 %v403, %v403
      %v544 = vmul.f32 %v406, %v406
      %v545 = vmul.f32 %v411, %v411
      %v546 = vmul.f32 %v414, %v414
      %v547 = vmul.f32 %v419, %v419
      %v548 = vmul.f32 %v422, %v422
      %v549 = vmul.f32 %v427, %v427
      %v550 = vmul.f32 %v430, %v430
      %v551 = vadd.f32 %v535, %v536
      %v552 = vadd.f32 %v551, %v537
      %v553 = vadd.f32 %v552, %v538
      %v554 = vadd.f32 %v553, %v539
      %v555 = vadd.f32 %v554, %v540
      %v556 = vadd.f32 %v555, %v541
      %v557 = vadd.f32 %v556, %v542
      %v558 = vadd.f32 %v557, %v543
      %v559 = vadd.f32 %v558, %v544
      %v560 = vadd.f32 %v559, %v545
      %v561 = vadd.f32 %v560, %v546
      %v562 = vadd.f32 %v561, %v547
      %v563 = vadd.f32 %v562, %v548
      %v564 = vadd.f32 %v563, %v549
      %v565 = vadd.f32 %v564, %v550
      %v566 = vrot.slane %v565, 4
      %v567 = vadd.f32 %v565, %v566
      %v568 = vrot.slane %v567, 2
      %v569 = vadd.f32 %v567, %v568
      %v570 = vrot.slane %v569, 1
      %v571 = vadd.f32 %v569, %v570
      %572 = vst [vmem:[%s229 + $0x1] sm:$0x1] %v571
      %s573 = smul.u32 16, %s19
      %p574 = scmp.lt.s32.totalorder %s573, 63
      %s575 = scalar_select %p574, %s573, 63
      %p576 = scmp.lt.s32.totalorder %s20, 0
      %s577 = scalar_select %p576, %s20, 0
      %s578 = sadd.s32 %s577, %s575
      %s579 = smul.addr %s578, 4
      %s580 = scalar_lea.vmem %s2, %s579
      %p581 = scmp.lt.s32.totalorder %s19, 3
      %s582 = scalar_select %p581, %s19, 3
      %p583 = scmp.lt.s32.totalorder %s20, 0
      %s584 = scalar_select %p583, %s20, 0
      %s585 = sadd.s32 %s584, %s582
      %s586 = smul.addr %s585, 2
      %s587 = scalar_lea.vmem %s3, %s586
      // Predicated region
      $region29: #{conv_bn.2} parent=27 // pred_check
        %p588 = pneg %p99
      $region30: #{conv_bn.2} parent=27 // pred_check_branch
        %590 = sbr.rel (%p588) target = $region32
      $region31: #{conv_bn.2} parent=27 // pred_region
        %s591 = smul.u32 16, %s19
      $region32: #{conv_bn.2} parent=27 // pred_fallthru
        _
      // Predicated region
      $region33: #{conv_bn.2} parent=27 // pred_check
        %p592 = pneg %p127
      $region34: #{conv_bn.2} parent=27 // pred_check_branch
        %594 = sbr.rel (%p592) target = $region36
      $region35: #{conv_bn.2} parent=27 // pred_region
        _
      $region36: #{conv_bn.2} parent=27 // pred_fallthru
        _
    $region28: #{conv_bn.2} parent=5 // pred_fallthru
      _
    %p595 = scmp.le.s32.totalorder 2, %s10
    // Predicated region
    $region37: #{conv_bn.2} parent=5 // pred_check
      %p596 = pneg %p595
    $region38: #{conv_bn.2} parent=5 // pred_check_branch
      %598 = sbr.rel (%p596) target = $region40
    $region39: #{conv_bn.2} parent=5 // pred_region
      %s599 = ssub.s32 %s10, 2
      // Predicated region
      $region41: #{conv_bn.2} parent=39 // pred_check
        %p600 = pneg %p105
      $region42: #{conv_bn.2} parent=39 // pred_check_branch
        %602 = sbr.rel (%p600) target = $region44
      $region43: #{conv_bn.2} parent=39 // pred_region
        %s603 = smul.u32 16, %s21
        %p604 = scmp.lt.s32.totalorder %s603, 63
        %s605 = scalar_select %p604, %s603, 63
        %p606 = scmp.lt.s32.totalorder %s22, 0
        %s607 = scalar_select %p606, %s22, 0
        %s608 = sadd.s32 %s607, %s605
        %s609 = smul.addr %s608, 4
        %s610 = scalar_lea.vmem %s2, %s609
      $region44: #{conv_bn.2} parent=39 // pred_fallthru
        _
      // Predicated region
      $region45: #{conv_bn.2} parent=39 // pred_check
        %p611 = pneg %p133
      $region46: #{conv_bn.2} parent=39 // pred_check_branch
        %613 = sbr.rel (%p611) target = $region48
      $region47: #{conv_bn.2} parent=39 // pred_region
        %p614 = scmp.lt.s32.totalorder %s21, 3
        %s615 = scalar_select %p614, %s21, 3
        %p616 = scmp.lt.s32.totalorder %s22, 0
        %s617 = scalar_select %p616, %s22, 0
        %s618 = sadd.s32 %s617, %s615
        %s619 = smul.addr %s618, 2
        %s620 = scalar_lea.vmem %s3, %s619
      $region48: #{conv_bn.2} parent=39 // pred_fallthru
        _
    $region40: #{conv_bn.2} parent=5 // pred_fallthru
      _
  $region6: #{conv_bn.2} parent=0 // loop_footer
    %s14 = sadd.s32 1, %s10
  $region7: #{conv_bn.2} parent=0 // loop_footer_branch
    %9 = sbr.rel target = $region3
  $region8: #{conv_bn.2} parent=0 // loop_exit
    _

// kernel: conv_bn.3
$region0: #{conv_bn.3}
  #allocation0 [shape = 'u32[]', space=smem, size = 0x4, offset = 0x4, fixed_abs, tag = 'smem constant byte address 0x4 - core index']
  #allocation1 [shape = 'u32[144,128]{1,0:T(1,128)}', space=vmem, size = 0x12000, scoped, tag = 'internal scratch']
  %s0 = inlined_call_operand.vmem [shape: bf16[512,128], index: 0, kind: input, shape index: {}]
  %s1 = inlined_call_operand.vmem [shape: f32[1,128], index: 1, kind: input, shape index: {}]
  %s2 = inlined_call_operand.vmem [shape: f32[1,128], index: 2, kind: input, shape index: {}]
  %s3 = inlined_call_operand.vmem [shape: f32[512,128], index: 3, kind: output, shape index: {}]
  %s4 = sld [smem:[#allocation0]]
  $region22: #{conv_bn.3} parent=0
    _
  %s6 = ssub.s32 1, %s4
  %s7 = scalar_select 0, %s6, %s4
  // Predicated region
  $region2: #{conv_bn.3} parent=0 // pred_check
    _
  $region3: #{conv_bn.3} parent=0 // pred_check_branch
    %9 = sbr.rel (0) target = $region5
  $region4: #{conv_bn.3} parent=0 // pred_region
    _
  $region5: #{conv_bn.3} parent=0 // pred_fallthru
    _
  // Predicated region
  $region6: #{conv_bn.3} parent=0 // pred_check
    _
  $region7: #{conv_bn.3} parent=0 // pred_check_branch
    %11 = sbr.rel (0) target = $region9
  $region8: #{conv_bn.3} parent=0 // pred_region
    _
  $region9: #{conv_bn.3} parent=0 // pred_fallthru
    _
  // Predicated region
  $region10: #{conv_bn.3} parent=0 // pred_check
    _
  $region11: #{conv_bn.3} parent=0 // pred_check_branch
    %13 = sbr.rel (0) target = $region13
  $region12: #{conv_bn.3} parent=0 // pred_region
    _
  $region13: #{conv_bn.3} parent=0 // pred_fallthru
    _
  %v14 = vld [vmem:[%s0] sm:$0xf]
  %v15 = vld [vmem:[%s0 + $0x4] sm:$0xf]
  %v16 = vld [vmem:[%s0 + $0x8] sm:$0xf]
  %v17 = vld [vmem:[%s0 + $0xc] sm:$0xf]
  %v18 = vld [vmem:[%s0 + $0x10] sm:$0xf]
  %v19 = vld [vmem:[%s0 + $0x14] sm:$0xf]
  %v20 = vld [vmem:[%s0 + $0x18] sm:$0xf]
  %v21 = vld [vmem:[%s0 + $0x1c] sm:$0xf]
  %v22 = vld [vmem:[%s0 + $0x20] sm:$0xf]
  %v23 = vld [vmem:[%s0 + $0x24] sm:$0xf]
  %v24 = vld [vmem:[%s0 + $0x28] sm:$0xf]
  %v25 = vld [vmem:[%s0 + $0x2c] sm:$0xf]
  %v26 = vld [vmem:[%s0 + $0x30] sm:$0xf]
  %v27 = vld [vmem:[%s0 + $0x34] sm:$0xf]
  %v28 = vld [vmem:[%s0 + $0x38] sm:$0xf]
  %v29 = vld [vmem:[%s0 + $0x3c] sm:$0xf]
  %v30 = vld [vmem:[%s0 + $0x40] sm:$0xf]
  %v31 = vld [vmem:[%s0 + $0x44] sm:$0xf]
  %v32 = vld [vmem:[%s0 + $0x48] sm:$0xf]
  %v33 = vld [vmem:[%s0 + $0x4c] sm:$0xf]
  %v34 = vld [vmem:[%s0 + $0x50] sm:$0xf]
  %v35 = vld [vmem:[%s0 + $0x54] sm:$0xf]
  %v36 = vld [vmem:[%s0 + $0x58] sm:$0xf]
  %v37 = vld [vmem:[%s0 + $0x5c] sm:$0xf]
  %v38 = vld [vmem:[%s0 + $0x60] sm:$0xf]
  %v39 = vld [vmem:[%s0 + $0x64] sm:$0xf]
  %v40 = vld [vmem:[%s0 + $0x68] sm:$0xf]
  %v41 = vld [vmem:[%s0 + $0x6c] sm:$0xf]
  %v42 = vld [vmem:[%s0 + $0x70] sm:$0xf]
  %v43 = vld [vmem:[%s0 + $0x74] sm:$0xf]
  %v44 = vld [vmem:[%s0 + $0x78] sm:$0xf]
  %v45 = vld [vmem:[%s0 + $0x7c] sm:$0xf]
  %v46 = vld [vmem:[%s0 + $0x80] sm:$0xf]
  %v47 = vld [vmem:[%s0 + $0x84] sm:$0xf]
  %v48 = vld [vmem:[%s0 + $0x88] sm:$0xf]
  %v49 = vld [vmem:[%s0 + $0x8c] sm:$0xf]
  %v50 = vld [vmem:[%s0 + $0x90] sm:$0xf]
  %v51 = vld [vmem:[%s0 + $0x94] sm:$0xf]
  %v52 = vld [vmem:[%s0 + $0x98] sm:$0xf]
  %v53 = vld [vmem:[%s0 + $0x9c] sm:$0xf]
  %v54 = vld [vmem:[%s0 + $0xa0] sm:$0xf]
  %v55 = vld [vmem:[%s0 + $0xa4] sm:$0xf]
  %v56 = vld [vmem:[%s0 + $0xa8] sm:$0xf]
  %v57 = vld [vmem:[%s0 + $0xac] sm:$0xf]
  %v58 = vld [vmem:[%s0 + $0xb0] sm:$0xf]
  %v59 = vld [vmem:[%s0 + $0xb4] sm:$0xf]
  %v60 = vld [vmem:[%s0 + $0xb8] sm:$0xf]
  %v61 = vld [vmem:[%s0 + $0xbc] sm:$0xf]
  %v62 = vld [vmem:[%s0 + $0xc0] sm:$0xf]
  %v63 = vld [vmem:[%s0 + $0xc4] sm:$0xf]
  %v64 = vld [vmem:[%s0 + $0xc8] sm:$0xf]
  %v65 = vld [vmem:[%s0 + $0xcc] sm:$0xf]
  %v66 = vld [vmem:[%s0 + $0xd0] sm:$0xf]
  %v67 = vld [vmem:[%s0 + $0xd4] sm:$0xf]
  %v68 = vld [vmem:[%s0 + $0xd8] sm:$0xf]
  %v69 = vld [vmem:[%s0 + $0xdc] sm:$0xf]
  %v70 = vld [vmem:[%s0 + $0xe0] sm:$0xf]
  %v71 = vld [vmem:[%s0 + $0xe4] sm:$0xf]
  %v72 = vld [vmem:[%s0 + $0xe8] sm:$0xf]
  %v73 = vld [vmem:[%s0 + $0xec] sm:$0xf]
  %v74 = vld [vmem:[%s0 + $0xf0] sm:$0xf]
  %v75 = vld [vmem:[%s0 + $0xf4] sm:$0xf]
  %v76 = vld [vmem:[%s0 + $0xf8] sm:$0xf]
  %v77 = vld [vmem:[%s0 + $0xfc] sm:$0xf]
  %v78 = vunpack.c.l.bf16 %v14
  %v79 = vunpack.c.l.bf16 %v15
  %v80 = vunpack.c.l.bf16 %v16
  %v81 = vunpack.c.l.bf16 %v17
  %v82 = vunpack.c.l.bf16 %v18
  %v83 = vunpack.c.l.bf16 %v19
  %v84 = vunpack.c.l.bf16 %v20
  %v85 = vunpack.c.l.bf16 %v21
  %v86 = vunpack.c.l.bf16 %v22
  %v87 = vunpack.c.l.bf16 %v23
  %v88 = vunpack.c.l.bf16 %v24
  %v89 = vunpack.c.l.bf16 %v25
  %v90 = vunpack.c.l.bf16 %v26
  %v91 = vunpack.c.l.bf16 %v27
  %v92 = vunpack.c.l.bf16 %v28
  %v93 = vunpack.c.l.bf16 %v29
  %v94 = vunpack.c.l.bf16 %v30
  %v95 = vunpack.c.l.bf16 %v31
  %v96 = vunpack.c.l.bf16 %v32
  %v97 = vunpack.c.l.bf16 %v33
  %v98 = vunpack.c.l.bf16 %v34
  %v99 = vunpack.c.l.bf16 %v35
  %v100 = vunpack.c.l.bf16 %v36
  %v101 = vunpack.c.l.bf16 %v37
  %v102 = vunpack.c.l.bf16 %v38
  %v103 = vunpack.c.l.bf16 %v39
  %v104 = vunpack.c.l.bf16 %v40
  %v105 = vunpack.c.l.bf16 %v41
  %v106 = vunpack.c.l.bf16 %v42
  %v107 = vunpack.c.l.bf16 %v43
  %v108 = vunpack.c.l.bf16 %v44
  %v109 = vunpack.c.l.bf16 %v45
  %v110 = vunpack.c.l.bf16 %v46
  %v111 = vunpack.c.l.bf16 %v47
  %v112 = vunpack.c.l.bf16 %v48
  %v113 = vunpack.c.l.bf16 %v49
  %v114 = vunpack.c.l.bf16 %v50
  %v115 = vunpack.c.l.bf16 %v51
  %v116 = vunpack.c.l.bf16 %v52
  %v117 = vunpack.c.l.bf16 %v53
  %v118 = vunpack.c.l.bf16 %v54
  %v119 = vunpack.c.l.bf16 %v55
  %v120 = vunpack.c.l.bf16 %v56
  %v121 = vunpack.c.l.bf16 %v57
  %v122 = vunpack.c.l.bf16 %v58
  %v123 = vunpack.c.l.bf16 %v59
  %v124 = vunpack.c.l.bf16 %v60
  %v125 = vunpack.c.l.bf16 %v61
  %v126 = vunpack.c.l.bf16 %v62
  %v127 = vunpack.c.l.bf16 %v63
  %v128 = vunpack.c.l.bf16 %v64
  %v129 = vunpack.c.l.bf16 %v65
  %v130 = vunpack.c.l.bf16 %v66
  %v131 = vunpack.c.l.bf16 %v67
  %v132 = vunpack.c.l.bf16 %v68
  %v133 = vunpack.c.l.bf16 %v69
  %v134 = vunpack.c.l.bf16 %v70
  %v135 = vunpack.c.l.bf16 %v71
  %v136 = vunpack.c.l.bf16 %v72
  %v137 = vunpack.c.l.bf16 %v73
  %v138 = vunpack.c.l.bf16 %v74
  %v139 = vunpack.c.l.bf16 %v75
  %v140 = vunpack.c.l.bf16 %v76
  %v141 = vunpack.c.l.bf16 %v77
  %v142 = vld [vmem:[%s1] sm:$0x1]
  %v144 = vlaneseq
  %v145 = vshrl.u32 %v144, 7
  %v146 = vsub.s32 0, %v145
  %v147 = vrot.slane %v142, %v146
  %v149 = vmul.f32 %v78, %v147
  %v150 = vmul.f32 %v79, %v147
  %v151 = vmul.f32 %v80, %v147
  %v152 = vmul.f32 %v81, %v147
  %v153 = vmul.f32 %v82, %v147
  %v154 = vmul.f32 %v83, %v147
  %v155 = vmul.f32 %v84, %v147
  %v156 = vmul.f32 %v85, %v147
  %v157 = vmul.f32 %v86, %v147
  %v158 = vmul.f32 %v87, %v147
  %v159 = vmul.f32 %v88, %v147
  %v160 = vmul.f32 %v89, %v147
  %v161 = vmul.f32 %v90, %v147
  %v162 = vmul.f32 %v91, %v147
  %v163 = vmul.f32 %v92, %v147
  %v164 = vmul.f32 %v93, %v147
  %v165 = vmul.f32 %v94, %v147
  %v166 = vmul.f32 %v95, %v147
  %v167 = vmul.f32 %v96, %v147
  %v168 = vmul.f32 %v97, %v147
  %v169 = vmul.f32 %v98, %v147
  %v170 = vmul.f32 %v99, %v147
  %v171 = vmul.f32 %v100, %v147
  %v172 = vmul.f32 %v101, %v147
  %v173 = vmul.f32 %v102, %v147
  %v174 = vmul.f32 %v103, %v147
  %v175 = vmul.f32 %v104, %v147
  %v176 = vmul.f32 %v105, %v147
  %v177 = vmul.f32 %v106, %v147
  %v178 = vmul.f32 %v107, %v147
  %v179 = vmul.f32 %v108, %v147
  %v180 = vmul.f32 %v109, %v147
  %v181 = vmul.f32 %v110, %v147
  %v182 = vmul.f32 %v111, %v147
  %v183 = vmul.f32 %v112, %v147
  %v184 = vmul.f32 %v113, %v147
  %v185 = vmul.f32 %v114, %v147
  %v186 = vmul.f32 %v115, %v147
  %v187 = vmul.f32 %v116, %v147
  %v188 = vmul.f32 %v117, %v147
  %v189 = vmul.f32 %v118, %v147
  %v190 = vmul.f32 %v119, %v147
  %v191 = vmul.f32 %v120, %v147
  %v192 = vmul.f32 %v121, %v147
  %v193 = vmul.f32 %v122, %v147
  %v194 = vmul.f32 %v123, %v147
  %v195 = vmul.f32 %v124, %v147
  %v196 = vmul.f32 %v125, %v147
  %v197 = vmul.f32 %v126, %v147
  %v198 = vmul.f32 %v127, %v147
  %v199 = vmul.f32 %v128, %v147
  %v200 = vmul.f32 %v129, %v147
  %v201 = vmul.f32 %v130, %v147
  %v202 = vmul.f32 %v131, %v147
  %v203 = vmul.f32 %v132, %v147
  %v204 = vmul.f32 %v133, %v147
  %v205 = vmul.f32 %v134, %v147
  %v206 = vmul.f32 %v135, %v147
  %v207 = vmul.f32 %v136, %v147
  %v208 = vmul.f32 %v137, %v147
  %v209 = vmul.f32 %v138, %v147
  %v210 = vmul.f32 %v139, %v147
  %v211 = vmul.f32 %v140, %v147
  %v212 = vmul.f32 %v141, %v147
  %v213 = vld [vmem:[%s2] sm:$0x1]
  %v215 = vlaneseq
  %v216 = vshrl.u32 %v215, 7
  %v217 = vsub.s32 0, %v216
  %v218 = vrot.slane %v213, %v217
  %v220 = vadd.f32 %v149, %v218
  %v221 = vadd.f32 %v150, %v218
  %v222 = vadd.f32 %v151, %v218
  %v223 = vadd.f32 %v152, %v218
  %v224 = vadd.f32 %v153, %v218
  %v225 = vadd.f32 %v154, %v218
  %v226 = vadd.f32 %v155, %v218
  %v227 = vadd.f32 %v156, %v218
  %v228 = vadd.f32 %v157, %v218
  %v229 = vadd.f32 %v158, %v218
  %v230 = vadd.f32 %v159, %v218
  %v231 = vadd.f32 %v160, %v218
  %v232 = vadd.f32 %v161, %v218
  %v233 = vadd.f32 %v162, %v218
  %v234 = vadd.f32 %v163, %v218
  %v235 = vadd.f32 %v164, %v218
  %v236 = vadd.f32 %v165, %v218
  %v237 = vadd.f32 %v166, %v218
  %v238 = vadd.f32 %v167, %v218
  %v239 = vadd.f32 %v168, %v218
  %v240 = vadd.f32 %v169, %v218
  %v241 = vadd.f32 %v170, %v218
  %v242 = vadd.f32 %v171, %v218
  %v243 = vadd.f32 %v172, %v218
  %v244 = vadd.f32 %v173, %v218
  %v245 = vadd.f32 %v174, %v218
  %v246 = vadd.f32 %v175, %v218
  %v247 = vadd.f32 %v176, %v218
  %v248 = vadd.f32 %v177, %v218
  %v249 = vadd.f32 %v178, %v218
  %v250 = vadd.f32 %v179, %v218
  %v251 = vadd.f32 %v180, %v218
  %v252 = vadd.f32 %v181, %v218
  %v253 = vadd.f32 %v182, %v218
  %v254 = vadd.f32 %v183, %v218
  %v255 = vadd.f32 %v184, %v218
  %v256 = vadd.f32 %v185, %v218
  %v257 = vadd.f32 %v186, %v218
  %v258 = vadd.f32 %v187, %v218
  %v259 = vadd.f32 %v188, %v218
  %v260 = vadd.f32 %v189, %v218
  %v261 = vadd.f32 %v190, %v218
  %v262 = vadd.f32 %v191, %v218
  %v263 = vadd.f32 %v192, %v218
  %v264 = vadd.f32 %v193, %v218
  %v265 = vadd.f32 %v194, %v218
  %v266 = vadd.f32 %v195, %v218
  %v267 = vadd.f32 %v196, %v218
  %v268 = vadd.f32 %v197, %v218
  %v269 = vadd.f32 %v198, %v218
  %v270 = vadd.f32 %v199, %v218
  %v271 = vadd.f32 %v200, %v218
  %v272 = vadd.f32 %v201, %v218
  %v273 = vadd.f32 %v202, %v218
  %v274 = vadd.f32 %v203, %v218
  %v275 = vadd.f32 %v204, %v218
  %v276 = vadd.f32 %v205, %v218
  %v277 = vadd.f32 %v206, %v218
  %v278 = vadd.f32 %v207, %v218
  %v279 = vadd.f32 %v208, %v218
  %v280 = vadd.f32 %v209, %v218
  %v281 = vadd.f32 %v210, %v218
  %v282 = vadd.f32 %v211, %v218
  %v283 = vadd.f32 %v212, %v218
  %284 = vst [vmem:[%s3] sm:$0xff] %v220
  %285 = vst [vmem:[%s3 + $0x8] sm:$0xff] %v221
  %286 = vst [vmem:[%s3 + $0x10] sm:$0xff] %v222
  %287 = vst [vmem:[%s3 + $0x18] sm:$0xff] %v223
  %288 = vst [vmem:[%s3 + $0x20] sm:$0xff] %v224
  %289 = vst [vmem:[%s3 + $0x28] sm:$0xff] %v225
  %290 = vst [vmem:[%s3 + $0x30] sm:$0xff] %v226
  %291 = vst [vmem:[%s3 + $0x38] sm:$0xff] %v227
  %292 = vst [vmem:[%s3 + $0x40] sm:$0xff] %v228
  %293 = vst [vmem:[%s3 + $0x48] sm:$0xff] %v229
  %294 = vst [vmem:[%s3 + $0x50] sm:$0xff] %v230
  %295 = vst [vmem:[%s3 + $0x58] sm:$0xff] %v231
  %296 = vst [vmem:[%s3 + $0x60] sm:$0xff] %v232
  %297 = vst [vmem:[%s3 + $0x68] sm:$0xff] %v233
  %298 = vst [vmem:[%s3 + $0x70] sm:$0xff] %v234
  %299 = vst [vmem:[%s3 + $0x78] sm:$0xff] %v235
  %300 = vst [vmem:[%s3 + $0x80] sm:$0xff] %v236
  %301 = vst [vmem:[%s3 + $0x88] sm:$0xff] %v237
  %302 = vst [vmem:[%s3 + $0x90] sm:$0xff] %v238
  %303 = vst [vmem:[%s3 + $0x98] sm:$0xff] %v239
  %304 = vst [vmem:[%s3 + $0xa0] sm:$0xff] %v240
  %305 = vst [vmem:[%s3 + $0xa8] sm:$0xff] %v241
  %306 = vst [vmem:[%s3 + $0xb0] sm:$0xff] %v242
  %307 = vst [vmem:[%s3 + $0xb8] sm:$0xff] %v243
  %308 = vst [vmem:[%s3 + $0xc0] sm:$0xff] %v244
  %309 = vst [vmem:[%s3 + $0xc8] sm:$0xff] %v245
  %310 = vst [vmem:[%s3 + $0xd0] sm:$0xff] %v246
  %311 = vst [vmem:[%s3 + $0xd8] sm:$0xff] %v247
  %312 = vst [vmem:[%s3 + $0xe0] sm:$0xff] %v248
  %313 = vst [vmem:[%s3 + $0xe8] sm:$0xff] %v249
  %314 = vst [vmem:[%s3 + $0xf0] sm:$0xff] %v250
  %315 = vst [vmem:[%s3 + $0xf8] sm:$0xff] %v251
  %316 = vst [vmem:[%s3 + $0x100] sm:$0xff] %v252
  %317 = vst [vmem:[%s3 + $0x108] sm:$0xff] %v253
  %318 = vst [vmem:[%s3 + $0x110] sm:$0xff] %v254
  %319 = vst [vmem:[%s3 + $0x118] sm:$0xff] %v255
  %320 = vst [vmem:[%s3 + $0x120] sm:$0xff] %v256
  %321 = vst [vmem:[%s3 + $0x128] sm:$0xff] %v257
  %322 = vst [vmem:[%s3 + $0x130] sm:$0xff] %v258
  %323 = vst [vmem:[%s3 + $0x138] sm:$0xff] %v259
  %324 = vst [vmem:[%s3 + $0x140] sm:$0xff] %v260
  %325 = vst [vmem:[%s3 + $0x148] sm:$0xff] %v261
  %326 = vst [vmem:[%s3 + $0x150] sm:$0xff] %v262
  %327 = vst [vmem:[%s3 + $0x158] sm:$0xff] %v263
  %328 = vst [vmem:[%s3 + $0x160] sm:$0xff] %v264
  %329 = vst [vmem:[%s3 + $0x168] sm:$0xff] %v265
  %330 = vst [vmem:[%s3 + $0x170] sm:$0xff] %v266
  %331 = vst [vmem:[%s3 + $0x178] sm:$0xff] %v267
  %332 = vst [vmem:[%s3 + $0x180] sm:$0xff] %v268
  %333 = vst [vmem:[%s3 + $0x188] sm:$0xff] %v269
  %334 = vst [vmem:[%s3 + $0x190] sm:$0xff] %v270
  %335 = vst [vmem:[%s3 + $0x198] sm:$0xff] %v271
  %336 = vst [vmem:[%s3 + $0x1a0] sm:$0xff] %v272
  %337 = vst [vmem:[%s3 + $0x1a8] sm:$0xff] %v273
  %338 = vst [vmem:[%s3 + $0x1b0] sm:$0xff] %v274
  %339 = vst [vmem:[%s3 + $0x1b8] sm:$0xff] %v275
  %340 = vst [vmem:[%s3 + $0x1c0] sm:$0xff] %v276
  %341 = vst [vmem:[%s3 + $0x1c8] sm:$0xff] %v277
  %342 = vst [vmem:[%s3 + $0x1d0] sm:$0xff] %v278
  %343 = vst [vmem:[%s3 + $0x1d8] sm:$0xff] %v279
  %344 = vst [vmem:[%s3 + $0x1e0] sm:$0xff] %v280
  %345 = vst [vmem:[%s3 + $0x1e8] sm:$0xff] %v281
  %346 = vst [vmem:[%s3 + $0x1f0] sm:$0xff] %v282
  %347 = vst [vmem:[%s3 + $0x1f8] sm:$0xff] %v283
  // Predicated region
  $region14: #{conv_bn.3} parent=0 // pred_check
    _
  $region15: #{conv_bn.3} parent=0 // pred_check_branch
    %349 = sbr.rel (0) target = $region17
  $region16: #{conv_bn.3} parent=0 // pred_region
    _
  $region17: #{conv_bn.3} parent=0 // pred_fallthru
    _
  // Predicated region
  $region18: #{conv_bn.3} parent=0 // pred_check
    _
  $region19: #{conv_bn.3} parent=0 // pred_check_branch
    %351 = sbr.rel (0) target = $region21
  $region20: #{conv_bn.3} parent=0 // pred_region
    _
  $region21: #{conv_bn.3} parent=0 // pred_fallthru
    _

</llo_original>
